<compile_context>
chip_gen: v5e
topology: v5e:2x2
jax: 0.10.0
libtpu: 0.0.40
codegen_flags: <defaults>
</compile_context>

<pallas_src>
import jax
import jax.numpy as jnp
from jax.experimental import pallas as pl
from jax.experimental.pallas import tpu as pltpu


def _floor_kernel(x_ref, o_ref):
    # elementwise floor on the whole VMEM tile (VPU; DMA is the binding resource)
    o_ref[...] = jnp.floor(x_ref[...])


def _pg_floor_fwd_impl(x):
    orig_shape = x.shape
    orig_dtype = x.dtype
    n = x.size

    if n == 0:
        return x

    LANE = 128
    itemsize = jnp.dtype(orig_dtype).itemsize
    # native sublane packing: 8 for 32-bit, 16 for bf16, 32 for 8-bit
    SUB = max(8, 32 // max(itemsize, 1))
    chunk = SUB * LANE

    x_flat = x.reshape(-1)

    # Bulk = largest prefix that is a whole number of (SUB, 128) tiles.
    n_bulk = (n // chunk) * chunk
    if n_bulk == 0:
        # tiny input — not worth a kernel launch
        return jnp.floor(x_flat).astype(orig_dtype).reshape(orig_shape)

    bulk_src = x_flat if n_bulk == n else x_flat[:n_bulk]
    rows = n_bulk // LANE                      # multiple of SUB
    bulk2d = bulk_src.reshape(rows, LANE)

    # ~4 MiB blocks (amortizes the ~0.35 us per-grid-step overhead; near HBM
    # roofline on v5e/v6e/v7x). 4 double-buffered blocks = 16 MiB <= 32 MiB limit.
    MAX_TILE_R = (4 * 1024 * 1024) // (LANE * itemsize)
    MAX_TILE_R = max(SUB, (MAX_TILE_R // SUB) * SUB)

    if rows > MAX_TILE_R:
        TILE_R = MAX_TILE_R
    elif rows >= 64:
        # split roughly in half so the parallel grid axis can use both v7x TCs
        TILE_R = ((rows // 2 + SUB - 1) // SUB) * SUB
    else:
        TILE_R = rows

    grid = (pl.cdiv(rows, TILE_R),)            # ragged grid; last block masked

    bulk_out = pl.pallas_call(
        _floor_kernel,
        out_shape=jax.ShapeDtypeStruct((rows, LANE), orig_dtype),
        grid_spec=pltpu.PrefetchScalarGridSpec(
            num_scalar_prefetch=0,
            grid=grid,
            in_specs=[pl.BlockSpec((TILE_R, LANE), lambda i: (i, 0))],
            out_specs=pl.BlockSpec((TILE_R, LANE), lambda i: (i, 0)),
        ),
        compiler_params=pltpu.CompilerParams(
            dimension_semantics=("parallel",),
            vmem_limit_bytes=32 * 1024 * 1024,
        ),
        cost_estimate=pl.CostEstimate(
            flops=n_bulk,
            transcendentals=0,
            bytes_accessed=2 * n_bulk * itemsize,
        ),
    )(bulk2d)

    if n_bulk == n:
        return bulk_out.reshape(orig_shape)

    # sub-1024-element tail: floor it directly (cheaper than padding the whole tensor)
    tail_out = jnp.floor(x_flat[n_bulk:]).astype(orig_dtype)
    return jnp.concatenate([bulk_out.reshape(-1), tail_out]).reshape(orig_shape)


# Proxy-gradient (straight-through) semantics of PGFloorFunc: forward = floor,
# backward = identity.
@jax.custom_vjp
def pg_floor(x):
    return _pg_floor_fwd_impl(x)


def _pg_floor_fwd(x):
    return _pg_floor_fwd_impl(x), None


def _pg_floor_bwd(_, g):
    return (g,)


pg_floor.defvjp(_pg_floor_fwd, _pg_floor_bwd)


if __name__ == "__main__":
    key = jax.random.PRNGKey(0)
    # small NCHW input consistent with the elementwise module
    x = jax.random.normal(key, (2, 4, 16, 16), dtype=jnp.float32) * 5.0

    y = pg_floor(x)
    jax.block_until_ready(y)

    # verify forward against jnp reference
    y_ref = jnp.floor(x)
    assert y.shape == x.shape and y.dtype == x.dtype
    assert bool(jnp.all(y == y_ref))

    # verify proxy (identity) gradient
    g = jax.grad(lambda t: jnp.sum(pg_floor(t)))(x)
    jax.block_until_ready(g)
    assert bool(jnp.all(g == jnp.ones_like(x)))

    print("KERNEL_OK")
</pallas_src>

<mosaic_0001>
module attributes {stable_mosaic.version = 11 : i64} {
  func.func @_floor_kernel(%arg0: i32, %arg1: memref<16x128xf32, #tpu.memory_space<vmem>>, %arg2: memref<16x128xf32, #tpu.memory_space<vmem>>) attributes {dimension_semantics = [#tpu.dimension_semantics<parallel>], iteration_bounds = array<i64: 1>, scalar_prefetch = 0 : i64, scratch_operands = 0 : i64, tpu.core_type = #tpu.core_type<tc>, window_params = [{transform_indices = @transform_0, window_bounds = array<i64: 16, 128>}, {transform_indices = @transform_1, window_bounds = array<i64: 16, 128>}]} {
    %c0 = arith.constant 0 : index
    %c0_0 = arith.constant 0 : index
    %0 = vector.load %arg1[%c0, %c0_0] : memref<16x128xf32, #tpu.memory_space<vmem>>, vector<16x128xf32>
    %1 = math.floor %0 : vector<16x128xf32>
    %c0_1 = arith.constant 0 : index
    %c0_2 = arith.constant 0 : index
    %2 = vector.load %arg2[%c0_1, %c0_2] : memref<16x128xf32, #tpu.memory_space<vmem>>, vector<16x128xf32>
    tpu.vector_store %arg2[%c0_1, %c0_2], %1 {strides = array<i32>} : memref<16x128xf32, #tpu.memory_space<vmem>>, vector<16x128xf32>,
    return
  }
  func.func @transform_0(%arg0: i32) -> (i32, i32) {
    %c0_i32 = arith.constant 0 : i32
    %c0_i32_0 = arith.constant 0 : i32
    return %arg0, %c0_i32 : i32, i32
  }
  func.func @transform_1(%arg0: i32) -> (i32, i32) {
    %c0_i32 = arith.constant 0 : i32
    %c0_i32_0 = arith.constant 0 : i32
    return %arg0, %c0_i32 : i32, i32
  }
}

</mosaic_0001>

<llo_original>
// kernel: tpu_custom_call.1
$region0: #{tpu_custom_call.1}
  #allocation0 [shape = 'u32[]', space=smem, size = 0x4, offset = 0x4, fixed_abs, tag = 'smem constant byte address 0x4 - core index']
  #allocation1 [shape = 'u32[72,128]{1,0:T(1,128)}', space=vmem, size = 0x9000, scoped, tag = 'internal scratch']
  %s0 = inlined_call_operand.hbm [shape: f32[16,128], index: 0, kind: input, shape index: {}]
  %s1 = inlined_call_operand.hbm [shape: f32[16,128], index: 1, kind: output, shape index: {}]
  %s2 = sld [smem:[#allocation0]]
  $region18: #{tpu_custom_call.1} parent=0
    _
  %s4 = ssub.s32 1, %s2
  %s5 = scalar_select 0, %s4, %s2
  $region1: #{tpu_custom_call.1} parent=0
    #allocation2 [shape = 'u8[8192]{0}', space=vmem, size = 0x2000, scoped, tag = 'input window, operand 0, single buffered']
    #allocation3 [shape = 's32[1]{0}', space=sflag, size = 0x4, scoped, tag = 'scoped memory for tpu_custom_call.1']
    #allocation4 [shape = 's32[1]{0}', space=sflag, size = 0x4, scoped, tag = 'scoped memory for tpu_custom_call.1']
    #allocation5 [shape = 'u8[8192]{0}', space=vmem, size = 0x2000, scoped, tag = 'output window, operand 0, single buffered']
    %6 = vsyncpa [#allocation3], 0
    %7 = vsyncpa [#allocation4], 0
    // Predicated region
    $region2: #{tpu_custom_call.1} parent=1 // pred_check
      _
    $region3: #{tpu_custom_call.1} parent=1 // pred_check_branch
      %9 = sbr.rel (0) target = $region5
    $region4: #{tpu_custom_call.1} parent=1 // pred_region
      %11 = vsyncadd [#allocation3], 0
      %s12 = sshll.u32 %s0, 4
      %s13 = int_to_ptr.hbm [resolvable:$true] %s12
      %s14 = sshll.u32 [#allocation2], 4
      %s15 = int_to_ptr.vmem [resolvable:$true] %s14
      %20 = dma.hbm_to_vmem [thread:$0]  %s13, 256, %s15, [#allocation3], 128, 128, 8
    $region5: #{tpu_custom_call.1} parent=1 // pred_fallthru
      _
    // Predicated region
    $region6: #{tpu_custom_call.1} parent=1 // pred_check
      _
    $region7: #{tpu_custom_call.1} parent=1 // pred_check_branch
      %22 = sbr.rel (0) target = $region9
    $region8: #{tpu_custom_call.1} parent=1 // pred_region
      %24 = dma.done [#allocation3], 256
    $region9: #{tpu_custom_call.1} parent=1 // pred_fallthru
      _
    %v25 = vld [vmem:[#allocation2] sm:$0xff]
    %v26 = vld [vmem:[#allocation2 + $0x8] sm:$0xff]
    %v27 = vfloor.f32 %v25
    %v28 = vfloor.f32 %v26
    %29 = vst [vmem:[#allocation5] sm:$0xff] %v27
    %30 = vst [vmem:[#allocation5 + $0x8] sm:$0xff] %v28
    // Predicated region
    $region10: #{tpu_custom_call.1} parent=1 // pred_check
      _
    $region11: #{tpu_custom_call.1} parent=1 // pred_check_branch
      %32 = sbr.rel (0) target = $region13
    $region12: #{tpu_custom_call.1} parent=1 // pred_region
      %34 = vsyncadd [#allocation4], 0
      %s35 = sshll.u32 [#allocation5], 4
      %s36 = int_to_ptr.vmem [resolvable:$true] %s35
      %s37 = sshll.u32 %s1, 4
      %s38 = int_to_ptr.hbm [resolvable:$true] %s37
      %43 = dma.vmem_to_hbm [thread:$0]  %s36, 256, %s38, [#allocation4], 128, 128, 8
    $region13: #{tpu_custom_call.1} parent=1 // pred_fallthru
      _
    // Predicated region
    $region14: #{tpu_custom_call.1} parent=1 // pred_check
      _
    $region15: #{tpu_custom_call.1} parent=1 // pred_check_branch
      %45 = sbr.rel (0) target = $region17
    $region16: #{tpu_custom_call.1} parent=1 // pred_region
      %47 = dma.done [#allocation4], 256
    $region17: #{tpu_custom_call.1} parent=1 // pred_fallthru
      _
    %48 = vsyncpa [#allocation3], 1
    %49 = vsyncpa [#allocation4], 1

</llo_original>
